<compile_context>
chip_gen: v6e
topology: v6e:2x2x1
jax: 0.10.0
libtpu: 0.0.40
codegen_flags: <defaults>
</compile_context>

<pallas_src>
import jax
import jax.numpy as jnp
from jax.experimental import pallas as pl
from jax.experimental.pallas import tpu as pltpu


def _round_up(a: int, m: int) -> int:
    return ((a + m - 1) // m) * m


def _lora_linear_kernel(x_ref, wt_ref, b_ref, a_ref, bb_ref, o_ref,
                        acc_ref, xa_ref):
    """One (i, j, k) grid step.

    x_ref : (tm, tk)   input rows (bf16)
    wt_ref: (tk, tn)   W^T tile   (bf16)
    b_ref : (1, tn)    bias tile  (f32)
    a_ref : (tk, r)    LoRA A tile (bf16)
    bb_ref: (r, tn)    alpha-scaled LoRA B tile (bf16)
    o_ref : (tm, tn)   output tile
    acc_ref: (tm, tn) f32 scratch  -- accumulates x @ W^T over k
    xa_ref : (tm, r)  f32 scratch  -- accumulates x @ A   over k
    """
    k = pl.program_id(2)

    @pl.when(k == 0)
    def _():
        acc_ref[...] = jnp.zeros_like(acc_ref)
        xa_ref[...] = jnp.zeros_like(xa_ref)

    x = x_ref[...]
    acc_ref[...] += jnp.dot(x, wt_ref[...], preferred_element_type=jnp.float32)
    xa_ref[...] += jnp.dot(x, a_ref[...], preferred_element_type=jnp.float32)

    @pl.when(k == pl.num_programs(2) - 1)
    def _():
        # LoRA epilogue: (x @ A) @ (alpha * B).  alpha already folded into B.
        lora = jnp.dot(xa_ref[...].astype(bb_ref.dtype), bb_ref[...],
                       preferred_element_type=jnp.float32)
        out = acc_ref[...] + b_ref[...] + lora
        o_ref[...] = out.astype(o_ref.dtype)


def linear_with_lora(x, wt, b, a, b_scaled, *,
                     tm=256, tn=512, tk=512,
                     compute_dtype=jnp.bfloat16, out_dtype=None):
    """y = x @ wt + b + (x @ a) @ b_scaled   (alpha already folded into b_scaled).

    x        : (M, K)
    wt       : (K, N)   = W.T  (nn.Linear weight transposed)
    b        : (1, N)   bias
    a        : (K, r)   LoRA A
    b_scaled : (r, N)   alpha * LoRA B
    """
    M, K = x.shape
    K2, N = wt.shape
    assert K2 == K
    r = a.shape[1]
    out_dtype = out_dtype or x.dtype

    # Clamp tiles to the (8/128-rounded) problem size so small layers collapse
    # to a single (or few) grid steps instead of padding to huge tiles.
    tm = min(tm, _round_up(M, 8))
    tn = min(tn, _round_up(N, 128))
    tk = min(tk, _round_up(K, 128))

    Mp = _round_up(M, tm)
    Np = _round_up(N, tn)
    Kp = _round_up(K, tk)

    # Cast to the MXU-native compute dtype and zero-pad to tile multiples
    # (zero padding is exact for the contraction and is sliced off the output).
    xp = jnp.zeros((Mp, Kp), compute_dtype).at[:M, :K].set(x.astype(compute_dtype))
    wtp = jnp.zeros((Kp, Np), compute_dtype).at[:K, :N].set(wt.astype(compute_dtype))
    bp = jnp.zeros((1, Np), jnp.float32).at[:, :N].set(b.astype(jnp.float32))
    ap = jnp.zeros((Kp, r), compute_dtype).at[:K, :].set(a.astype(compute_dtype))
    bbp = jnp.zeros((r, Np), compute_dtype).at[:, :N].set(b_scaled.astype(compute_dtype))

    grid = (Mp // tm, Np // tn, Kp // tk)

    out = pl.pallas_call(
        _lora_linear_kernel,
        out_shape=jax.ShapeDtypeStruct((Mp, Np), out_dtype),
        grid_spec=pltpu.PrefetchScalarGridSpec(
            num_scalar_prefetch=0,
            grid=grid,
            in_specs=[
                pl.BlockSpec((tm, tk), lambda i, j, k: (i, k)),   # x tile
                pl.BlockSpec((tk, tn), lambda i, j, k: (k, j)),   # W^T tile
                pl.BlockSpec((1, tn), lambda i, j, k: (0, j)),    # bias tile
                pl.BlockSpec((tk, r), lambda i, j, k: (k, 0)),    # LoRA A tile
                pl.BlockSpec((r, tn), lambda i, j, k: (0, j)),    # alpha*B tile
            ],
            out_specs=pl.BlockSpec((tm, tn), lambda i, j, k: (i, j)),
            scratch_shapes=[
                pltpu.VMEM((tm, tn), jnp.float32),   # base accumulator
                pltpu.VMEM((tm, r), jnp.float32),    # x @ A accumulator
            ],
        ),
        compiler_params=pltpu.CompilerParams(
            dimension_semantics=("parallel", "parallel", "arbitrary"),
        ),
    )(xp, wtp, bp, ap, bbp)

    return out[:M, :N]


if __name__ == "__main__":
    # Small shapes implied by the module: nn.Linear(in_dim, out_dim), LoRA rank r.
    batch, seq = 2, 8
    in_dim, out_dim, rank = 32, 64, 4
    alpha = 2.0

    key = jax.random.PRNGKey(0)
    kx, kw, kb, ka, kbb = jax.random.split(key, 5)

    x3 = jax.random.normal(kx, (batch, seq, in_dim), dtype=jnp.float32)
    W = jax.random.normal(kw, (out_dim, in_dim), dtype=jnp.float32) * 0.1  # nn.Linear weight (out, in)
    bias = jax.random.normal(kb, (out_dim,), dtype=jnp.float32) * 0.1
    # LoRA A ~ kaiming-uniform stand-in; the module inits B=0, but we use a
    # small random B here so the LoRA path is actually exercised.
    A = jax.random.uniform(ka, (in_dim, rank), dtype=jnp.float32, minval=-0.3, maxval=0.3)
    B = jax.random.normal(kbb, (rank, out_dim), dtype=jnp.float32) * 0.05

    # One-time weight prep: transpose W, fold alpha into B.
    x2 = x3.reshape(batch * seq, in_dim)          # (M, K)
    wt = W.T                                      # (K, N)
    b2 = bias.reshape(1, out_dim)                 # (1, N)
    B_scaled = alpha * B                          # fold alpha once

    out2 = linear_with_lora(x2, wt, b2, A, B_scaled)
    out = out2.reshape(batch, seq, out_dim)
    jax.block_until_ready(out)

    # Reference in plain JAX mirroring the kernel's bf16 operands / f32 accum.
    cd = jnp.bfloat16
    x_bf, wt_bf = x2.astype(cd), wt.astype(cd)
    a_bf, bb_bf = A.astype(cd), B_scaled.astype(cd)
    base = jnp.dot(x_bf, wt_bf, preferred_element_type=jnp.float32)
    xa = jnp.dot(x_bf, a_bf, preferred_element_type=jnp.float32)
    lora = jnp.dot(xa.astype(cd), bb_bf, preferred_element_type=jnp.float32)
    ref = (base + b2 + lora).astype(out2.dtype).reshape(batch, seq, out_dim)

    assert jnp.allclose(out, ref, atol=1e-3, rtol=1e-3), "mismatch vs reference"

    print("KERNEL_OK")
</pallas_src>

<mosaic_0001>
module attributes {stable_mosaic.version = 11 : i64} {
  func.func @_lora_linear_kernel(%arg0: i32, %arg1: i32, %arg2: i32, %arg3: memref<16x128xbf16, #tpu.memory_space<vmem>>, %arg4: memref<128x128xbf16, #tpu.memory_space<vmem>>, %arg5: memref<1x128xf32, #tpu.memory_space<vmem>>, %arg6: memref<128x4xbf16, #tpu.memory_space<vmem>>, %arg7: memref<4x128xbf16, #tpu.memory_space<vmem>>, %arg8: memref<16x128xf32, #tpu.memory_space<vmem>>, %arg9: memref<16x128xf32, #tpu.memory_space<vmem>>, %arg10: memref<16x4xf32, #tpu.memory_space<vmem>>) attributes {dimension_semantics = [#tpu.dimension_semantics<parallel>, #tpu.dimension_semantics<parallel>, #tpu.dimension_semantics<arbitrary>], iteration_bounds = array<i64: 1, 1, 1>, scalar_prefetch = 0 : i64, scratch_operands = 2 : i64, tpu.core_type = #tpu.core_type<tc>, window_params = [{transform_indices = @transform_0, window_bounds = array<i64: 16, 128>}, {transform_indices = @transform_1, window_bounds = array<i64: 128, 128>}, {transform_indices = @transform_2, window_bounds = array<i64: 1, 128>}, {transform_indices = @transform_3, window_bounds = array<i64: 128, 4>}, {transform_indices = @transform_4, window_bounds = array<i64: 4, 128>}, {transform_indices = @transform_5, window_bounds = array<i64: 16, 128>}]} {
    %c0_i32 = arith.constant 0 : i32
    %0 = arith.cmpi eq, %arg2, %c0_i32 : i32
    %1 = arith.extui %0 : i1 to i32
    %c0_i32_0 = arith.constant 0 : i32
    %2 = arith.cmpi ne, %1, %c0_i32_0 : i32
    scf.if %2 {
      %cst_17 = arith.constant 0.000000e+00 : f32
      %17 = vector.broadcast %cst_17 : f32 to vector<16x128xf32>
      %c0_18 = arith.constant 0 : index
      %c0_19 = arith.constant 0 : index
      %18 = vector.load %arg9[%c0_18, %c0_19] : memref<16x128xf32, #tpu.memory_space<vmem>>, vector<16x128xf32>
      tpu.vector_store %arg9[%c0_18, %c0_19], %17 {strides = array<i32>} : memref<16x128xf32, #tpu.memory_space<vmem>>, vector<16x128xf32>,
      %cst_20 = arith.constant 0.000000e+00 : f32
      %19 = vector.broadcast %cst_20 : f32 to vector<16x4xf32>
      %c0_21 = arith.constant 0 : index
      %c0_22 = arith.constant 0 : index
      %20 = vector.load %arg10[%c0_21, %c0_22] : memref<16x4xf32, #tpu.memory_space<vmem>>, vector<16x4xf32>
      tpu.vector_store %arg10[%c0_21, %c0_22], %19 {strides = array<i32>} : memref<16x4xf32, #tpu.memory_space<vmem>>, vector<16x4xf32>,
    } else {
    }
    %c0 = arith.constant 0 : index
    %c0_1 = arith.constant 0 : index
    %3 = vector.load %arg3[%c0, %c0_1] : memref<16x128xbf16, #tpu.memory_space<vmem>>, vector<16x128xbf16>
    %c0_2 = arith.constant 0 : index
    %c0_3 = arith.constant 0 : index
    %4 = vector.load %arg9[%c0_2, %c0_3] : memref<16x128xf32, #tpu.memory_space<vmem>>, vector<16x128xf32>
    %c0_4 = arith.constant 0 : index
    %c0_5 = arith.constant 0 : index
    %5 = vector.load %arg4[%c0_4, %c0_5] : memref<128x128xbf16, #tpu.memory_space<vmem>>, vector<128x128xbf16>
    %cst = arith.constant dense<0.000000e+00> : vector<16x128xf32>
    %6 = tpu.matmul %3, %5, %cst {dimension_numbers = #tpu.dot_dimension_numbers<[1], [0], [0], [1], [0, 0, 1, 1], [], []>} : vector<16x128xbf16>, vector<128x128xbf16>, vector<16x128xf32> -> vector<16x128xf32>
    %7 = arith.addf %4, %6 : vector<16x128xf32>
    %c0_6 = arith.constant 0 : index
    %c0_7 = arith.constant 0 : index
    %8 = vector.load %arg9[%c0_6, %c0_7] : memref<16x128xf32, #tpu.memory_space<vmem>>, vector<16x128xf32>
    tpu.vector_store %arg9[%c0_6, %c0_7], %7 {strides = array<i32>} : memref<16x128xf32, #tpu.memory_space<vmem>>, vector<16x128xf32>,
    %c0_8 = arith.constant 0 : index
    %c0_9 = arith.constant 0 : index
    %9 = vector.load %arg10[%c0_8, %c0_9] : memref<16x4xf32, #tpu.memory_space<vmem>>, vector<16x4xf32>
    %c0_10 = arith.constant 0 : index
    %c0_11 = arith.constant 0 : index
    %10 = vector.load %arg6[%c0_10, %c0_11] : memref<128x4xbf16, #tpu.memory_space<vmem>>, vector<128x4xbf16>
    %cst_12 = arith.constant dense<0.000000e+00> : vector<16x4xf32>
    %11 = tpu.matmul %3, %10, %cst_12 {dimension_numbers = #tpu.dot_dimension_numbers<[1], [0], [0], [1], [0, 0, 1, 1], [], []>} : vector<16x128xbf16>, vector<128x4xbf16>, vector<16x4xf32> -> vector<16x4xf32>
    %12 = arith.addf %9, %11 : vector<16x4xf32>
    %c0_13 = arith.constant 0 : index
    %c0_14 = arith.constant 0 : index
    %13 = vector.load %arg10[%c0_13, %c0_14] : memref<16x4xf32, #tpu.memory_space<vmem>>, vector<16x4xf32>
    tpu.vector_store %arg10[%c0_13, %c0_14], %12 {strides = array<i32>} : memref<16x4xf32, #tpu.memory_space<vmem>>, vector<16x4xf32>,
    %c0_i32_15 = arith.constant 0 : i32
    %14 = arith.cmpi eq, %arg2, %c0_i32_15 : i32
    %15 = arith.extui %14 : i1 to i32
    %c0_i32_16 = arith.constant 0 : i32
    %16 = arith.cmpi ne, %15, %c0_i32_16 : i32
    scf.if %16 {
      %c0_17 = arith.constant 0 : index
      %c0_18 = arith.constant 0 : index
      %17 = vector.load %arg10[%c0_17, %c0_18] : memref<16x4xf32, #tpu.memory_space<vmem>>, vector<16x4xf32>
      %18 = arith.truncf %17 : vector<16x4xf32> to vector<16x4xbf16>
      %c0_19 = arith.constant 0 : index
      %c0_20 = arith.constant 0 : index
      %19 = vector.load %arg7[%c0_19, %c0_20] : memref<4x128xbf16, #tpu.memory_space<vmem>>, vector<4x128xbf16>
      %cst_21 = arith.constant dense<0.000000e+00> : vector<16x128xf32>
      %20 = tpu.matmul %18, %19, %cst_21 {dimension_numbers = #tpu.dot_dimension_numbers<[1], [0], [0], [1], [0, 0, 1, 1], [], []>} : vector<16x4xbf16>, vector<4x128xbf16>, vector<16x128xf32> -> vector<16x128xf32>
      %c0_22 = arith.constant 0 : index
      %c0_23 = arith.constant 0 : index
      %21 = vector.load %arg9[%c0_22, %c0_23] : memref<16x128xf32, #tpu.memory_space<vmem>>, vector<16x128xf32>
      %c0_24 = arith.constant 0 : index
      %c0_25 = arith.constant 0 : index
      %22 = vector.load %arg5[%c0_24, %c0_25] : memref<1x128xf32, #tpu.memory_space<vmem>>, vector<1x128xf32>
      %23 = vector.broadcast %22 : vector<1x128xf32> to vector<16x128xf32>
      %24 = arith.addf %21, %23 : vector<16x128xf32>
      %25 = arith.addf %24, %20 : vector<16x128xf32>
      %c0_26 = arith.constant 0 : index
      %c0_27 = arith.constant 0 : index
      %26 = vector.load %arg8[%c0_26, %c0_27] : memref<16x128xf32, #tpu.memory_space<vmem>>, vector<16x128xf32>
      tpu.vector_store %arg8[%c0_26, %c0_27], %25 {strides = array<i32>} : memref<16x128xf32, #tpu.memory_space<vmem>>, vector<16x128xf32>,
    } else {
    }
    return
  }
  func.func @transform_0(%arg0: i32, %arg1: i32, %arg2: i32) -> (i32, i32) {
    %c0_i32 = arith.constant 0 : i32
    return %arg0, %arg2 : i32, i32
  }
  func.func @transform_1(%arg0: i32, %arg1: i32, %arg2: i32) -> (i32, i32) {
    %c0_i32 = arith.constant 0 : i32
    return %arg2, %arg1 : i32, i32
  }
  func.func @transform_2(%arg0: i32, %arg1: i32, %arg2: i32) -> (i32, i32) {
    %c0_i32 = arith.constant 0 : i32
    %c0_i32_0 = arith.constant 0 : i32
    return %c0_i32, %arg1 : i32, i32
  }
  func.func @transform_3(%arg0: i32, %arg1: i32, %arg2: i32) -> (i32, i32) {
    %c0_i32 = arith.constant 0 : i32
    %c0_i32_0 = arith.constant 0 : i32
    return %arg2, %c0_i32 : i32, i32
  }
  func.func @transform_4(%arg0: i32, %arg1: i32, %arg2: i32) -> (i32, i32) {
    %c0_i32 = arith.constant 0 : i32
    %c0_i32_0 = arith.constant 0 : i32
    return %c0_i32, %arg1 : i32, i32
  }
  func.func @transform_5(%arg0: i32, %arg1: i32, %arg2: i32) -> (i32, i32) {
    %c0_i32 = arith.constant 0 : i32
    return %arg0, %arg1 : i32, i32
  }
}

</mosaic_0001>

<llo_original>
// kernel: tpu_custom_call.1
$region0: #{tpu_custom_call.1}
  #allocation0 [shape = 'u32[]', space=smem, size = 0x4, offset = 0x4, fixed_abs, tag = 'smem constant byte address 0x4 - core index']
  #allocation1 [shape = 'u32[144,128]{1,0:T(1,128)}', space=vmem, size = 0x12000, scoped, tag = 'internal scratch']
  #allocation2 [shape = 'f32[16,128]{1,0:T(8,128)}', space=vmem, size = 0x2000, scoped, tag = 'scratch operand']
  #allocation3 [shape = 'f32[16,4]{1,0:T(8,128)}', space=vmem, size = 0x2000, scoped, tag = 'scratch operand']
  %s0 = inlined_call_operand.hbm [shape: bf16[16,128], index: 0, kind: input, shape index: {}]
  %s1 = inlined_call_operand.vmem [shape: bf16[128,128], index: 1, kind: input, shape index: {}]
  %s2 = inlined_call_operand.vmem [shape: f32[1,128], index: 2, kind: input, shape index: {}]
  %s3 = inlined_call_operand.vmem [shape: bf16[128,4], index: 3, kind: input, shape index: {}]
  %s4 = inlined_call_operand.vmem [shape: bf16[4,128], index: 4, kind: input, shape index: {}]
  %s5 = inlined_call_operand.hbm [shape: f32[16,128], index: 5, kind: output, shape index: {}]
  %s6 = sld [smem:[#allocation0]]
  $region42: #{tpu_custom_call.1} parent=0
    _
  %s8 = ssub.s32 1, %s6
  %s9 = scalar_select 0, %s8, %s6
  $region1: #{tpu_custom_call.1} parent=0
    #allocation4 [shape = 'u8[4096]{0}', space=vmem, size = 0x1000, scoped, tag = 'input window, operand 0, single buffered']
    #allocation5 [shape = 's32[1]{0}', space=sflag, size = 0x4, scoped, tag = 'scoped memory for tpu_custom_call.1']
    #allocation6 [shape = 's32[1]{0}', space=sflag, size = 0x4, scoped, tag = 'scoped memory for tpu_custom_call.1']
    #allocation7 [shape = 'u8[8192]{0}', space=vmem, size = 0x2000, scoped, tag = 'output window, operand 0, single buffered']
    %10 = vsyncpa [#allocation5], 0
    %11 = vsyncpa [#allocation6], 0
    // Predicated region
    $region2: #{tpu_custom_call.1} parent=1 // pred_check
      _
    $region3: #{tpu_custom_call.1} parent=1 // pred_check_branch
      %13 = sbr.rel (0) target = $region5
    $region4: #{tpu_custom_call.1} parent=1 // pred_region
      %s15 = ssub.s32 128, 128
      %16 = vsyncadd [#allocation5], %s15
      %s17 = sshll.u32 [#allocation4], 4
      %s18 = int_to_ptr.vmem [resolvable:$true] %s17
      %23 = dma.hbm_to_vmem [thread:$0]  %s0, 128, %s18, [#allocation5], 64, 64, 4
    $region5: #{tpu_custom_call.1} parent=1 // pred_fallthru
      _
    // Predicated region
    $region6: #{tpu_custom_call.1} parent=1 // pred_check
      _
    $region7: #{tpu_custom_call.1} parent=1 // pred_check_branch
      %25 = sbr.rel (0) target = $region9
    $region8: #{tpu_custom_call.1} parent=1 // pred_region
      _
    $region9: #{tpu_custom_call.1} parent=1 // pred_fallthru
      _
    // Predicated region
    $region10: #{tpu_custom_call.1} parent=1 // pred_check
      _
    $region11: #{tpu_custom_call.1} parent=1 // pred_check_branch
      %27 = sbr.rel (0) target = $region13
    $region12: #{tpu_custom_call.1} parent=1 // pred_region
      _
    $region13: #{tpu_custom_call.1} parent=1 // pred_fallthru
      _
    // Predicated region
    $region14: #{tpu_custom_call.1} parent=1 // pred_check
      _
    $region15: #{tpu_custom_call.1} parent=1 // pred_check_branch
      %29 = sbr.rel (0) target = $region17
    $region16: #{tpu_custom_call.1} parent=1 // pred_region
      _
    $region17: #{tpu_custom_call.1} parent=1 // pred_fallthru
      _
    // Predicated region
    $region18: #{tpu_custom_call.1} parent=1 // pred_check
      _
    $region19: #{tpu_custom_call.1} parent=1 // pred_check_branch
      %31 = sbr.rel (0) target = $region21
    $region20: #{tpu_custom_call.1} parent=1 // pred_region
      _
    $region21: #{tpu_custom_call.1} parent=1 // pred_fallthru
      _
    // Predicated region
    $region22: #{tpu_custom_call.1} parent=1 // pred_check
      _
    $region23: #{tpu_custom_call.1} parent=1 // pred_check_branch
      %33 = sbr.rel (0) target = $region25
    $region24: #{tpu_custom_call.1} parent=1 // pred_region
      %34 = dma.done [#allocation5], 128
    $region25: #{tpu_custom_call.1} parent=1 // pred_fallthru
      _
    %p36 = scmp.eq.s32.totalorder 0, 0
    // Predicated region
    $region26: #{tpu_custom_call.1} parent=1 // pred_check
      %p37 = pneg %p36
    $region27: #{tpu_custom_call.1} parent=1 // pred_check_branch
      %39 = sbr.rel (%p37) target = $region29
    $region28: #{tpu_custom_call.1} parent=1 // pred_region
      %40 = vst [vmem:[#allocation2] sm:$0xff] 0.0
      %41 = vst [vmem:[#allocation2 + $0x8] sm:$0xff] 0.0
      %vm42 = vcmask 31744
      %43 = vst.msk [vmem:[#allocation3] sm:$0xff] %vm42, 0.0
      %44 = vst.msk [vmem:[#allocation3 + $0x8] sm:$0xff] %vm42, 0.0
    $region29: #{tpu_custom_call.1} parent=1 // pred_fallthru
      _
    %v45 = vld [vmem:[#allocation4] sm:$0xf]
    %v46 = vld [vmem:[#allocation4 + $0x4] sm:$0xf]
    %v47 = vld [vmem:[#allocation2] sm:$0xff]
    %v48 = vld [vmem:[#allocation2 + $0x8] sm:$0xff]
    %v49 = vld [vmem:[%s1] sm:$0xf]
    %v50 = vld [vmem:[%s1 + $0x4] sm:$0xf]
    %v51 = vld [vmem:[%s1 + $0x8] sm:$0xf]
    %v52 = vld [vmem:[%s1 + $0xc] sm:$0xf]
    %v53 = vld [vmem:[%s1 + $0x10] sm:$0xf]
    %v54 = vld [vmem:[%s1 + $0x14] sm:$0xf]
    %v55 = vld [vmem:[%s1 + $0x18] sm:$0xf]
    %v56 = vld [vmem:[%s1 + $0x1c] sm:$0xf]
    %v57 = vld [vmem:[%s1 + $0x20] sm:$0xf]
    %v58 = vld [vmem:[%s1 + $0x24] sm:$0xf]
    %v59 = vld [vmem:[%s1 + $0x28] sm:$0xf]
    %v60 = vld [vmem:[%s1 + $0x2c] sm:$0xf]
    %v61 = vld [vmem:[%s1 + $0x30] sm:$0xf]
    %v62 = vld [vmem:[%s1 + $0x34] sm:$0xf]
    %v63 = vld [vmem:[%s1 + $0x38] sm:$0xf]
    %v64 = vld [vmem:[%s1 + $0x3c] sm:$0xf]
    %v67 = vunpack.c.l.b16 %v45
    %v68 = vunpack.c.l.b16 %v46
    %v69 = vpack.c.b16 %v68, %v67
    %v87 = vunpack.c.l.b16 %v49
    %v88 = vunpack.c.l.b16 %v50
    %v89 = vunpack.c.l.b16 %v51
    %v90 = vunpack.c.l.b16 %v52
    %v91 = vunpack.c.l.b16 %v53
    %v92 = vunpack.c.l.b16 %v54
    %v93 = vunpack.c.l.b16 %v55
    %v94 = vunpack.c.l.b16 %v56
    %v95 = vunpack.c.l.b16 %v57
    %v96 = vunpack.c.l.b16 %v58
    %v97 = vunpack.c.l.b16 %v59
    %v98 = vunpack.c.l.b16 %v60
    %v99 = vunpack.c.l.b16 %v61
    %v100 = vunpack.c.l.b16 %v62
    %v101 = vunpack.c.l.b16 %v63
    %v102 = vunpack.c.l.b16 %v64
    %v103 = vpack.c.b16 %v88, %v87
    %v104 = vpack.c.b16 %v90, %v89
    %v105 = vpack.c.b16 %v92, %v91
    %v106 = vpack.c.b16 %v94, %v93
    %v107 = vpack.c.b16 %v96, %v95
    %v108 = vpack.c.b16 %v98, %v97
    %v109 = vpack.c.b16 %v100, %v99
    %v110 = vpack.c.b16 %v102, %v101
    %119 = vmatprep.subr.bf16.mxu0 0
    %120 = vmatpush1.bf16.msra.mxu0 %v110
    %121 = vmatprep.subr.bf16.mxu0 0
    %122 = vmatpush1.bf16.msra.mxu0 %v109
    %123 = vmatprep.subr.bf16.mxu0 0
    %124 = vmatpush1.bf16.msra.mxu0 %v108
    %125 = vmatprep.subr.bf16.mxu0 0
    %126 = vmatpush1.bf16.msra.mxu0 %v107
    %127 = vmatprep.subr.bf16.mxu0 0
    %128 = vmatpush1.bf16.msra.mxu0 %v106
    %129 = vmatprep.subr.bf16.mxu0 0
    %130 = vmatpush1.bf16.msra.mxu0 %v105
    %131 = vmatprep.subr.bf16.mxu0 0
    %132 = vmatpush1.bf16.msra.mxu0 %v104
    %133 = vmatprep.subr.bf16.mxu0 0
    %134 = vmatpush1.bf16.msra.mxu0 %v103
    %135 = vmatprep.subr.bf16.mxu0 0
    %136 = vmatpush2.bf16.msra.mxu0 0
    %137 = vmatprep.subr.bf16.mxu0 0
    %138 = vmatpush2.bf16.msra.mxu0 0
    %139 = vmatprep.subr.bf16.mxu0 0
    %140 = vmatpush2.bf16.msra.mxu0 0
    %141 = vmatprep.subr.bf16.mxu0 0
    %142 = vmatpush2.bf16.msra.mxu0 0
    %143 = vmatprep.subr.bf16.mxu0 0
    %144 = vmatpush2.bf16.msra.mxu0 0
    %145 = vmatprep.subr.bf16.mxu0 0
    %146 = vmatpush2.bf16.msra.mxu0 0
    %147 = vmatprep.subr.bf16.mxu0 0
    %148 = vmatpush2.bf16.msra.mxu0 0
    %149 = vmatprep.subr.bf16.mxu0 0
    %150 = vmatpush2.bf16.msra.mxu0 0
    %151 = vmatprep.mubr.bf16.mxu0 0
    %152 = vmatmul.mubr.bf16.gmra.mxu0 %v69
    %v153 = vpop.f32.mrf.mxu0
    %v154 = vadd.f32 0.0, %v153
    %v155 = vpop.f32.mrf.mxu0
    %v156 = vpop.f32.mrf.mxu0
    %v157 = vadd.f32 0.0, %v156
    %v158 = vpop.f32.mrf.mxu0
    %159 = vdwg.mxu0
    %v160 = vadd.f32 %v47, %v154
    %v161 = vadd.f32 %v48, %v157
    %162 = vst [vmem:[#allocation2] sm:$0xff] %v160
    %163 = vst [vmem:[#allocation2 + $0x8] sm:$0xff] %v161
    %v164 = vld [vmem:[#allocation3] sm:$0xff]
    %v165 = vld [vmem:[#allocation3 + $0x8] sm:$0xff]
    %v166 = vld [vmem:[%s3] sm:$0xf]
    %v167 = vld [vmem:[%s3 + $0x4] sm:$0xf]
    %v168 = vld [vmem:[%s3 + $0x8] sm:$0xf]
    %v169 = vld [vmem:[%s3 + $0xc] sm:$0xf]
    %v170 = vld [vmem:[%s3 + $0x10] sm:$0xf]
    %v171 = vld [vmem:[%s3 + $0x14] sm:$0xf]
    %v172 = vld [vmem:[%s3 + $0x18] sm:$0xf]
    %v173 = vld [vmem:[%s3 + $0x1c] sm:$0xf]
    %v174 = vld [vmem:[%s3 + $0x20] sm:$0xf]
    %v175 = vld [vmem:[%s3 + $0x24] sm:$0xf]
    %v176 = vld [vmem:[%s3 + $0x28] sm:$0xf]
    %v177 = vld [vmem:[%s3 + $0x2c] sm:$0xf]
    %v178 = vld [vmem:[%s3 + $0x30] sm:$0xf]
    %v179 = vld [vmem:[%s3 + $0x34] sm:$0xf]
    %v180 = vld [vmem:[%s3 + $0x38] sm:$0xf]
    %v181 = vld [vmem:[%s3 + $0x3c] sm:$0xf]
    %v198 = vunpack.c.l.b16 %v166
    %v199 = vunpack.c.l.b16 %v167
    %v200 = vunpack.c.l.b16 %v168
    %v201 = vunpack.c.l.b16 %v169
    %v202 = vunpack.c.l.b16 %v170
    %v203 = vunpack.c.l.b16 %v171
    %v204 = vunpack.c.l.b16 %v172
    %v205 = vunpack.c.l.b16 %v173
    %v206 = vunpack.c.l.b16 %v174
    %v207 = vunpack.c.l.b16 %v175
    %v208 = vunpack.c.l.b16 %v176
    %v209 = vunpack.c.l.b16 %v177
    %v210 = vunpack.c.l.b16 %v178
    %v211 = vunpack.c.l.b16 %v179
    %v212 = vunpack.c.l.b16 %v180
    %v213 = vunpack.c.l.b16 %v181
    %v214 = vpack.c.b16 %v199, %v198
    %v215 = vpack.c.b16 %v201, %v200
    %v216 = vpack.c.b16 %v203, %v202
    %v217 = vpack.c.b16 %v205, %v204
    %v218 = vpack.c.b16 %v207, %v206
    %v219 = vpack.c.b16 %v209, %v208
    %v220 = vpack.c.b16 %v211, %v210
    %v221 = vpack.c.b16 %v213, %v212
    %230 = vmatprep.subr.bf16.mxu0 0
    %231 = vmatpush1.bf16.msra.mxu0 %v221
    %232 = vmatprep.subr.bf16.mxu0 0
    %233 = vmatpush1.bf16.msra.mxu0 %v220
    %234 = vmatprep.subr.bf16.mxu0 0
    %235 = vmatpush1.bf16.msra.mxu0 %v219
    %236 = vmatprep.subr.bf16.mxu0 0
    %237 = vmatpush1.bf16.msra.mxu0 %v218
    %238 = vmatprep.subr.bf16.mxu0 0
    %239 = vmatpush1.bf16.msra.mxu0 %v217
    %240 = vmatprep.subr.bf16.mxu0 0
    %241 = vmatpush1.bf16.msra.mxu0 %v216
    %242 = vmatprep.subr.bf16.mxu0 0
    %243 = vmatpush1.bf16.msra.mxu0 %v215
    %244 = vmatprep.subr.bf16.mxu0 0
    %245 = vmatpush1.bf16.msra.mxu0 %v214
    %246 = vmatprep.subr.bf16.mxu0 0
    %247 = vmatpush2.bf16.msra.mxu0 0
    %248 = vmatprep.subr.bf16.mxu0 0
    %249 = vmatpush2.bf16.msra.mxu0 0
    %250 = vmatprep.subr.bf16.mxu0 0
    %251 = vmatpush2.bf16.msra.mxu0 0
    %252 = vmatprep.subr.bf16.mxu0 0
    %253 = vmatpush2.bf16.msra.mxu0 0
    %254 = vmatprep.subr.bf16.mxu0 0
    %255 = vmatpush2.bf16.msra.mxu0 0
    %256 = vmatprep.subr.bf16.mxu0 0
    %257 = vmatpush2.bf16.msra.mxu0 0
    %258 = vmatprep.subr.bf16.mxu0 0
    %259 = vmatpush2.bf16.msra.mxu0 0
    %260 = vmatprep.subr.bf16.mxu0 0
    %261 = vmatpush2.bf16.msra.mxu0 0
    %262 = vmatprep.mubr.bf16.mxu0 0
    %263 = vmatmul.mubr.bf16.gmra.mxu0 %v69
    %v264 = vpop.f32.mrf.mxu0
    %v265 = vadd.f32 0.0, %v264
    %v266 = vpop.f32.mrf.mxu0
    %v267 = vpop.f32.mrf.mxu0
    %v268 = vadd.f32 0.0, %v267
    %v269 = vpop.f32.mrf.mxu0
    %270 = vdwg.mxu0
    %v271 = vadd.f32 %v164, %v265
    %v272 = vadd.f32 %v165, %v268
    %vm273 = vcmask 31744
    %274 = vst.msk [vmem:[#allocation3] sm:$0xff] %vm273, %v271
    %275 = vst.msk [vmem:[#allocation3 + $0x8] sm:$0xff] %vm273, %v272
    // Predicated region
    $region30: #{tpu_custom_call.1} parent=1 // pred_check
      %p276 = pneg %p36
    $region31: #{tpu_custom_call.1} parent=1 // pred_check_branch
      %278 = sbr.rel (%p276) target = $region33
    $region32: #{tpu_custom_call.1} parent=1 // pred_region
      %v279 = vld [vmem:[#allocation3] sm:$0xff]
      %v280 = vld [vmem:[#allocation3 + $0x8] sm:$0xff]
      %v281 = vpack.c.bf16 %v280, %v279
      %v282 = vld [vmem:[%s4] sm:$0x3]
      %v284 = vsel %vm273, %v281, 0
      %vm286 = vcmask 1041408
      %v288 = vsel %vm286, %v282, 0
      %290 = vmatprep.subr.bf16.mxu0 0
      %291 = vmatpush1.bf16.msra.mxu0 0
      %292 = vmatprep.subr.bf16.mxu0 0
      %293 = vmatpush1.bf16.msra.mxu0 0
      %294 = vmatprep.subr.bf16.mxu0 0
      %295 = vmatpush1.bf16.msra.mxu0 0
      %296 = vmatprep.subr.bf16.mxu0 0
      %297 = vmatpush1.bf16.msra.mxu0 0
      %298 = vmatprep.subr.bf16.mxu0 0
      %299 = vmatpush1.bf16.msra.mxu0 0
      %300 = vmatprep.subr.bf16.mxu0 0
      %301 = vmatpush1.bf16.msra.mxu0 0
      %302 = vmatprep.subr.bf16.mxu0 0
      %303 = vmatpush1.bf16.msra.mxu0 0
      %304 = vmatprep.subr.bf16.mxu0 0
      %305 = vmatpush1.bf16.msra.mxu0 %v288
      %306 = vmatprep.subr.bf16.mxu0 0
      %307 = vmatpush2.bf16.msra.mxu0 0
      %308 = vmatprep.subr.bf16.mxu0 0
      %309 = vmatpush2.bf16.msra.mxu0 0
      %310 = vmatprep.subr.bf16.mxu0 0
      %311 = vmatpush2.bf16.msra.mxu0 0
      %312 = vmatprep.subr.bf16.mxu0 0
      %313 = vmatpush2.bf16.msra.mxu0 0
      %314 = vmatprep.subr.bf16.mxu0 0
      %315 = vmatpush2.bf16.msra.mxu0 0
      %316 = vmatprep.subr.bf16.mxu0 0
      %317 = vmatpush2.bf16.msra.mxu0 0
      %318 = vmatprep.subr.bf16.mxu0 0
      %319 = vmatpush2.bf16.msra.mxu0 0
      %320 = vmatprep.subr.bf16.mxu0 0
      %321 = vmatpush2.bf16.msra.mxu0 0
      %322 = vmatprep.mubr.bf16.mxu0 0
      %323 = vmatmul.mubr.bf16.gmra.mxu0 %v284
      %v324 = vpop.f32.mrf.mxu0
      %v325 = vadd.f32 0.0, %v324
      %v326 = vpop.f32.mrf.mxu0
      %v327 = vpop.f32.mrf.mxu0
      %v328 = vadd.f32 0.0, %v327
      %v329 = vpop.f32.mrf.mxu0
      %330 = vdwg.mxu0
      %v331 = vld [vmem:[#allocation2] sm:$0xff]
      %v332 = vld [vmem:[#allocation2 + $0x8] sm:$0xff]
      %v333 = vld [vmem:[%s2] sm:$0x1]
      %v335 = vlaneseq
      %v336 = vshrl.u32 %v335, 7
      %v337 = vsub.s32 0, %v336
      %v338 = vrot.slane %v333, %v337
      %v340 = vadd.f32 %v331, %v338
      %v341 = vadd.f32 %v332, %v338
      %v342 = vadd.f32 %v340, %v325
      %v343 = vadd.f32 %v341, %v328
      %344 = vst [vmem:[#allocation7] sm:$0xff] %v342
      %345 = vst [vmem:[#allocation7 + $0x8] sm:$0xff] %v343
    $region33: #{tpu_custom_call.1} parent=1 // pred_fallthru
      _
    // Predicated region
    $region34: #{tpu_custom_call.1} parent=1 // pred_check
      _
    $region35: #{tpu_custom_call.1} parent=1 // pred_check_branch
      %347 = sbr.rel (0) target = $region37
    $region36: #{tpu_custom_call.1} parent=1 // pred_region
      %s349 = ssub.s32 256, 256
      %350 = vsyncadd [#allocation6], %s349
      %s351 = sshll.u32 [#allocation7], 4
      %s352 = int_to_ptr.vmem [resolvable:$true] %s351
      %357 = dma.vmem_to_hbm [thread:$0]  %s352, 256, %s5, [#allocation6], 128, 128, 8
    $region37: #{tpu_custom_call.1} parent=1 // pred_fallthru
      _
    // Predicated region
    $region38: #{tpu_custom_call.1} parent=1 // pred_check
      _
    $region39: #{tpu_custom_call.1} parent=1 // pred_check_branch
      %359 = sbr.rel (0) target = $region41
    $region40: #{tpu_custom_call.1} parent=1 // pred_region
      %360 = dma.done [#allocation6], 256
    $region41: #{tpu_custom_call.1} parent=1 // pred_fallthru
      _
    %361 = vsyncpa [#allocation5], 1
    %362 = vsyncpa [#allocation6], 1

</llo_original>
